<compile_context>
chip_gen: v5e
topology: v5e:2x2
jax: 0.10.0
libtpu: 0.0.40
codegen_flags: <defaults>
</compile_context>

<pallas_src>
import functools

import jax
import jax.numpy as jnp
from jax.experimental import pallas as pl
from jax.experimental.pallas import tpu as pltpu


LANE = 128


def _round_up(x, m):
    return ((x + m - 1) // m) * m


def _pad_last(a, to):
    pad = to - a.shape[-1]
    if pad <= 0:
        return a
    widths = [(0, 0)] * (a.ndim - 1) + [(0, pad)]
    return jnp.pad(a, widths)


def _pad2(a, rows, cols):
    return jnp.pad(a, ((0, rows - a.shape[0]), (0, cols - a.shape[1])))


@functools.lru_cache(maxsize=None)
def _vmem_budget():
    """Generation-aware (vmem_limit_bytes, per-call tile budget)."""
    phys = 64 * 1024 * 1024
    try:
        info = pltpu.get_tpu_info()
        cap = getattr(info, "vmem_capacity_bytes", None)
        if cap:
            phys = int(cap)
    except Exception:
        pass
    # ~48 MiB on v7x (64 MiB physical / TC), ~96 MiB on v5e/v6e (128 MiB).
    limit = min((int(phys) * 3) // 4, 100 * 1024 * 1024)
    return limit, limit // 2


def _flat_dot(x3, w):
    """(a, b, k) @ (k, n) -> (a, b, n) with f32 accumulation.

    Flattens to one large-M 2-D matmul when the middle dim is sublane aligned
    (guarantees the MXU sees M = a*b); otherwise uses the 3-D dot_general
    lowering (avoids an in-kernel relayout for ragged middle dims).
    """
    a, b, k = x3.shape
    if b % 8 == 0:
        y = jnp.dot(x3.reshape(a * b, k), w, preferred_element_type=jnp.float32)
        return y.reshape(a, b, w.shape[1])
    return jax.lax.dot_general(
        x3, w, dimension_numbers=(((2,), (0,)), ((), ())),
        preferred_element_type=jnp.float32)


# ----------------------------------------------------------------------------
# Kernel 1: review CNN  (im2col matmul -> bias -> relu -> running max-pool)
# ----------------------------------------------------------------------------
def review_cnn_kernel(x_ref, w_ref, b_ref, o_ref, *, kernel_size, chunk):
    x = x_ref[...]                                   # (tr, n_t, w_d)  bf16
    w = w_ref[...]                                   # (ks*w_d, nf_p)  bf16
    b = b_ref[...]                                   # (1, nf_p)       f32
    tr, n_t, w_d = x.shape
    n_out = n_t - kernel_size + 1

    # Chunked over output positions with a running max: avoids materializing
    # the full (tr, n_out, nf_p) activation (the main cap on the row tile).
    # TODO(synk): audit the im2col concat (sublane-shifted slices) in a bundle
    #             dump; switch to per-tap matmul accumulation if XLU/vld slots
    #             saturate on a given generation.
    result = None
    for start in range(0, n_out, chunk):
        clen = min(chunk, n_out - start)
        xw = jnp.concatenate(
            [x[:, start + k:start + k + clen, :] for k in range(kernel_size)],
            axis=-1)                                 # (tr, clen, ks*w_d) bf16
        acc = _flat_dot(xw, w)                       # (tr, clen, nf_p)   f32
        acc = jnp.maximum(acc + b[None], 0.0)        # bias + ReLU (f32 VPU)
        cmax = jnp.max(acc, axis=1)                  # (tr, nf_p)
        result = cmax if result is None else jnp.maximum(result, cmax)
    o_ref[...] = result


def review_cnn(x, w, b, kernel_size):
    """x: (R, n_t, w_d); w: (ks, w_d, nf); b: (1, nf) -> (R, nf_p) f32.

    Output lanes beyond nf are exactly zero.
    """
    R, n_t, w_d = x.shape
    ks, w_d2, nf = w.shape
    assert w_d2 == w_d and ks == kernel_size
    nf_p = _round_up(nf, LANE)
    n_out = n_t - kernel_size + 1
    chunk = min(n_out, 128)

    x = x.astype(jnp.bfloat16)
    w2 = _pad_last(w.reshape(ks * w_d, nf), nf_p).astype(jnp.bfloat16)
    b2 = _pad_last(b, nf_p).astype(jnp.float32)

    vmem_limit, tile_budget = _vmem_budget()
    # per-row VMEM bytes: double-buffered bf16 doc tile + im2col chunk temp +
    # f32 conv chunk + running max + double-buffered f32 output row.
    per_row = (2 * 2 * n_t * w_d                 # input tile (bf16, 2 buffers)
               + 2 * chunk * ks * w_d            # im2col chunk (bf16)
               + 4 * chunk * nf_p                # conv chunk accumulator (f32)
               + 3 * 4 * nf_p)                   # running max + output buffers
    tr = max(8, min(2048, tile_budget // max(per_row, 1)))
    tr = (tr // 8) * 8
    if R >= 16:
        # keep >= 2 grid steps so "parallel" can shard across 2 TCs (v7x)
        tr = min(tr, _round_up(pl.cdiv(R, 2), 8))
    elif tr > R:
        tr = R
    grid = (pl.cdiv(R, tr),)

    return pl.pallas_call(
        functools.partial(review_cnn_kernel, kernel_size=kernel_size,
                          chunk=chunk),
        grid=grid,
        in_specs=[
            pl.BlockSpec((tr, n_t, w_d), lambda i: (i, 0, 0)),
            pl.BlockSpec((ks * w_d, nf_p), lambda i: (0, 0)),
            pl.BlockSpec((1, nf_p), lambda i: (0, 0)),
        ],
        out_specs=pl.BlockSpec((tr, nf_p), lambda i: (i, 0)),
        out_shape=jax.ShapeDtypeStruct((R, nf_p), jnp.float32),
        compiler_params=pltpu.CompilerParams(
            dimension_semantics=("parallel",),
            vmem_limit_bytes=vmem_limit),
        cost_estimate=pl.CostEstimate(
            flops=2 * R * n_out * ks * w_d * nf_p,
            transcendentals=0,
            bytes_accessed=(2 * R * n_t * w_d + 2 * ks * w_d * nf_p
                            + 4 * nf_p + 4 * R * nf_p)),
    )(x, w2, b2)


# ----------------------------------------------------------------------------
# Kernel 2 (fused): user attention + item attention + final prediction
# ----------------------------------------------------------------------------
def attn_predict_kernel(ufea_ref, uimp_ref, umask_ref, uemb_ref,
                        ifea_ref, iimp_ref, imask_ref, iemb_ref,
                        u_w_ref, u_b_ref, u_wa_ref, u_ba_ref,
                        i_w_ref, i_b_ref, i_wa_ref, i_ba_ref,
                        wp_ref, o_ref):
    def side(fea, imp_bf, mask, id_emb, w_stack, bias, wa_row, ba):
        # ONE fused K = 2*fc_p matmul: [fea | imp] @ [wr ; wemb]  (bf16 MXU
        # operands, f32 accumulation); post-matmul math stays in f32 (VPU).
        xk = jnp.concatenate([fea.astype(jnp.bfloat16), imp_bf], axis=-1)
        h = _flat_dot(xk, w_stack)                               # (tb,R,F) f32
        h = jnp.maximum(h + bias[None], 0.0)                     # ReLU
        # attention score: N=1 "matmul" on the VPU + lane reduce (keeps MXU
        # columns from being 1/256 occupied).
        att = jnp.sum(h * wa_row[None], axis=-1, keepdims=True) + ba
        # softmax_with_pad, exactly as in the reference: exp -> mask -> norm;
        # the divide goes to the EUP via the approximate reciprocal.
        att = jnp.exp(att) * mask[:, :, None]
        inv = pl.reciprocal(jnp.sum(att, axis=1, keepdims=True) + 1e-10,
                            approx=True)
        att = att * inv
        return jnp.sum(fea * att, axis=1) + id_emb               # (tb, fc_p)

    u = side(ufea_ref[...], uimp_ref[...], umask_ref[...], uemb_ref[...],
             u_w_ref[...], u_b_ref[...], u_wa_ref[...], u_ba_ref[0, 0])
    i = side(ifea_ref[...], iimp_ref[...], imask_ref[...], iemb_ref[...],
             i_w_ref[...], i_b_ref[...], i_wa_ref[...], i_ba_ref[0, 0])
    # final rating: elementwise product + lane reduce (N=1, keep off the MXU).
    # TODO(synk): emit the prediction lane-dense as (1, B) once the tiny
    #             transpose is verified; current (tb, 1) store is negligible.
    o_ref[...] = jnp.sum((u * i) * wp_ref[...], axis=-1, keepdims=True)


def attn_predict(u_fea, i_import, u_mask, user_embed,
                 i_fea, u_import, i_mask, item_embed,
                 u_w_stack, u_bias, u_wa, u_ba,
                 i_w_stack, i_bias, i_wa, i_ba, wp):
    B, uR, nf_p = u_fea.shape
    _, iR, _ = i_fea.shape
    fc_p = user_embed.shape[1]

    vmem_limit, tile_budget = _vmem_budget()
    # per-batch-row VMEM bytes (double-buffered pipelined operands + temps).
    per_b = ((uR + iR) * (2 * 4 * nf_p              # fea (f32, 2 buffers)
                          + 2 * 2 * fc_p            # importance (bf16, 2 buf)
                          + 2 * (nf_p + fc_p)       # in-kernel concat (bf16)
                          + 4 * fc_p                # h (f32)
                          + 2 * 4)                  # masks (2 buffers)
             + 2 * 2 * 4 * fc_p + 32)               # id embeddings + scalars
    tb = max(8, min(1024, tile_budget // max(per_b, 1)))
    tb = (tb // 8) * 8
    if B > 8:
        tb = min(tb, _round_up(pl.cdiv(B, 2), 8))   # >= 2 grid steps (v7x)
    if tb >= B:
        tb = B
    grid = (pl.cdiv(B, tb),)

    def b3(r, d):
        return pl.BlockSpec((tb, r, d), lambda i: (i, 0, 0))

    def b2(d):
        return pl.BlockSpec((tb, d), lambda i: (i, 0))

    def cst(shape):
        n = len(shape)
        return pl.BlockSpec(shape, lambda i, _n=n: (0,) * _n)

    def smem():
        return pl.BlockSpec(memory_space=pltpu.MemorySpace.SMEM)

    # TODO(synk): single-buffer (pipeline_mode=pl.Buffered(1)) the grid-
    #             invariant weight blocks once verified on the target jax.
    in_specs = [
        b3(uR, nf_p), b3(uR, fc_p), b2(uR), b2(fc_p),
        b3(iR, nf_p), b3(iR, fc_p), b2(iR), b2(fc_p),
        cst(u_w_stack.shape), cst(u_bias.shape), cst(u_wa.shape), smem(),
        cst(i_w_stack.shape), cst(i_bias.shape), cst(i_wa.shape), smem(),
        cst(wp.shape),
    ]

    flops = (2 * B * (uR + iR) * (2 * fc_p) * fc_p
             + 6 * B * (uR + iR) * fc_p + 4 * B * fc_p)
    bytes_accessed = (4 * B * (uR + iR) * nf_p        # fea f32
                      + 2 * B * (uR + iR) * fc_p      # importance bf16
                      + 4 * B * (uR + iR)             # masks
                      + 8 * B * fc_p                  # id embeddings
                      + 2 * 2 * (2 * fc_p) * fc_p     # stacked weights bf16
                      + 4 * B)                        # output

    return pl.pallas_call(
        attn_predict_kernel,
        grid=grid,
        in_specs=in_specs,
        out_specs=pl.BlockSpec((tb, 1), lambda i: (i, 0)),
        out_shape=jax.ShapeDtypeStruct((B, 1), jnp.float32),
        compiler_params=pltpu.CompilerParams(
            dimension_semantics=("parallel",),
            vmem_limit_bytes=vmem_limit),
        cost_estimate=pl.CostEstimate(
            flops=flops,
            transcendentals=B * (uR + iR),
            bytes_accessed=bytes_accessed),
    )(u_fea, i_import, u_mask, user_embed,
      i_fea, u_import, i_mask, item_embed,
      u_w_stack, u_bias, u_wa, u_ba,
      i_w_stack, i_bias, i_wa, i_ba, wp)


# ----------------------------------------------------------------------------
# Parameters (deterministic, synthetic) and forward glue
# ----------------------------------------------------------------------------
def init_params(key, vocab, word_dim, n_filters, kernel_size, fc_dim,
                user_size, item_size):
    ks = jax.random.split(key, 24)
    u = lambda k, shp, lo, hi: jax.random.uniform(k, shp, jnp.float32, lo, hi)
    n = lambda k, shp, std: std * jax.random.normal(k, shp, jnp.float32)
    p = {
        "word_embedding": n(ks[0], (vocab, word_dim), 0.1),
        # conv weights stored as (kernel_size, word_dim, n_filters)
        "user_cnn_w": n(ks[1], (kernel_size, word_dim, n_filters), 0.05),
        "user_cnn_b": u(ks[2], (1, n_filters), -0.1, 0.1),
        "item_cnn_w": n(ks[3], (kernel_size, word_dim, n_filters), 0.05),
        "item_cnn_b": u(ks[4], (1, n_filters), -0.1, 0.1),
        "user_review_w": u(ks[5], (n_filters, fc_dim), -0.1, 0.1),
        "user_review_b": jnp.full((1, fc_dim), 0.1, jnp.float32),
        "item_review_w": u(ks[6], (n_filters, fc_dim), -0.1, 0.1),
        "item_review_b": jnp.full((1, fc_dim), 0.1, jnp.float32),
        "user_embed": n(ks[7], (user_size, fc_dim), 0.1),
        "item_embed": n(ks[8], (item_size, fc_dim), 0.1),
        "user_importance_embed": n(ks[9], (user_size, fc_dim), 0.1),
        "item_importance_embed": n(ks[10], (item_size, fc_dim), 0.1),
        "user_embed_linear_w": u(ks[11], (fc_dim, fc_dim), -0.1, 0.1),
        "user_embed_linear_b": jnp.full((1, fc_dim), 0.1, jnp.float32),
        "item_embed_linear_w": u(ks[12], (fc_dim, fc_dim), -0.1, 0.1),
        "item_embed_linear_b": jnp.full((1, fc_dim), 0.1, jnp.float32),
        "user_att_w": u(ks[13], (fc_dim, 1), 0.0, 0.1),
        "user_att_b": n(ks[14], (1, 1), 0.05),
        "item_att_w": u(ks[15], (fc_dim, 1), 0.0, 0.1),
        "item_att_b": n(ks[16], (1, 1), 0.05),
        "user_b1": n(ks[17], (1, fc_dim), 0.01),
        "item_b1": n(ks[18], (1, fc_dim), 0.01),
        "predictor_w": n(ks[19], (fc_dim, 1), 0.1),
    }
    return p


def narre_forward(p, user_id, item_id, user_doc, item_doc,
                  user2item_id, item2user_id, kernel_size):
    fc = p["user_embed"].shape[1]
    nf = p["user_cnn_w"].shape[2]
    assert nf == fc, "NARRE requires n_filters == fc_dim"
    fc_p = _round_up(fc, LANE)

    # Parameter padding / gathers happen once at trace time (tiny, fused by
    # XLA); padded lanes carry exact zeros through every kernel.
    user_embed = _pad_last(p["user_embed"], fc_p)[user_id]            # (B, fc_p)
    item_embed = _pad_last(p["item_embed"], fc_p)[item_id]
    # importance embeddings are only matmul operands -> keep them in bf16.
    u_import = _pad_last(p["user_importance_embed"],
                         fc_p)[item2user_id].astype(jnp.bfloat16)
    i_import = _pad_last(p["item_importance_embed"],
                         fc_p)[user2item_id].astype(jnp.bfloat16)

    # Word-embedding gather in bf16: halves the HBM write+read of the doc
    # tensor (the dominant HBM cost on v5e/v6e).
    # TODO(synk): gather embedding rows in-kernel (scalar-prefetch DMA) so the
    # (B, R, n_t, w_d) doc tensor is never fully materialized in HBM.
    we_bf = p["word_embedding"].astype(jnp.bfloat16)
    ud = we_bf[user_doc]                                              # (B, uR, n_t, w_d)
    idc = we_bf[item_doc]                                             # (B, iR, n_t, w_d)
    b_s, u_n_r, n_t, w_d = ud.shape
    _, i_n_r, _, _ = idc.shape

    u_fea = review_cnn(ud.reshape(b_s * u_n_r, n_t, w_d),
                       p["user_cnn_w"], p["user_cnn_b"], kernel_size)
    i_fea = review_cnn(idc.reshape(b_s * i_n_r, n_t, w_d),
                       p["item_cnn_w"], p["item_cnn_b"], kernel_size)
    u_fea = u_fea.reshape(b_s, u_n_r, fc_p)
    i_fea = i_fea.reshape(b_s, i_n_r, fc_p)

    u_mask = (user2item_id > 0).astype(jnp.float32)
    i_mask = (item2user_id > 0).astype(jnp.float32)

    # lane-padded, row-stacked (K = 2*fc_p) bf16 weights for the fused
    # attention matmul; biases of both linears + b1 folded into one f32 row.
    u_w_stack = jnp.concatenate(
        [_pad2(p["user_review_w"], fc_p, fc_p),
         _pad2(p["item_embed_linear_w"], fc_p, fc_p)],
        axis=0).astype(jnp.bfloat16)                                   # (2fc_p, fc_p)
    u_bias = _pad_last(p["user_review_b"] + p["item_embed_linear_b"]
                       + p["user_b1"], fc_p)
    u_wa = _pad_last(p["user_att_w"].T, fc_p)                          # (1, fc_p)
    u_ba = p["user_att_b"]                                             # (1, 1) SMEM

    i_w_stack = jnp.concatenate(
        [_pad2(p["item_review_w"], fc_p, fc_p),
         _pad2(p["user_embed_linear_w"], fc_p, fc_p)],
        axis=0).astype(jnp.bfloat16)
    i_bias = _pad_last(p["item_review_b"] + p["user_embed_linear_b"]
                       + p["item_b1"], fc_p)
    i_wa = _pad_last(p["item_att_w"].T, fc_p)
    i_ba = p["item_att_b"]

    wp = _pad_last(p["predictor_w"].T, fc_p)                           # (1, fc_p)

    # dropout layers: eval mode (identity)
    r = attn_predict(u_fea, i_import, u_mask, user_embed,
                     i_fea, u_import, i_mask, item_embed,
                     u_w_stack, u_bias, u_wa, u_ba,
                     i_w_stack, i_bias, i_wa, i_ba, wp)
    return r.reshape(-1)


# ----------------------------------------------------------------------------
# Pure-JAX f32 reference (same math, unpadded) for a correctness check
# ----------------------------------------------------------------------------
def narre_forward_ref(p, user_id, item_id, user_doc, item_doc,
                      user2item_id, item2user_id, kernel_size):
    we = p["word_embedding"]
    user_embed = p["user_embed"][user_id]
    item_embed = p["item_embed"][item_id]
    u_import = p["user_importance_embed"][item2user_id]
    i_import = p["item_importance_embed"][user2item_id]

    def cnn(doc, w, b):
        B, R, T, D = doc.shape
        x = doc.reshape(B * R, T, D)
        n_out = T - kernel_size + 1
        acc = jnp.zeros((B * R, n_out, w.shape[2]), jnp.float32)
        for k in range(kernel_size):
            acc = acc + jnp.einsum("rtd,df->rtf", x[:, k:k + n_out, :], w[k])
        acc = jnp.maximum(acc + b[None], 0.0)
        return jnp.max(acc, axis=1).reshape(B, R, -1)

    u_fea = cnn(we[user_doc], p["user_cnn_w"], p["user_cnn_b"])
    i_fea = cnn(we[item_doc], p["item_cnn_w"], p["item_cnn_b"])

    def side(fea, imp, mask, id_emb, wr, br, wemb, bemb, b1, wa, ba):
        h = jnp.maximum(fea @ wr + br[None] + imp @ wemb + bemb[None] + b1[None], 0.0)
        att = h @ wa + ba[None]
        att = jnp.exp(att) * mask[:, :, None]
        att = att / (jnp.sum(att, axis=1, keepdims=True) + 1e-10)
        return jnp.sum(fea * att, axis=1) + id_emb

    u_mask = (user2item_id > 0).astype(jnp.float32)
    i_mask = (item2user_id > 0).astype(jnp.float32)
    u_agg = side(u_fea, i_import, u_mask, user_embed,
                 p["user_review_w"], p["user_review_b"],
                 p["item_embed_linear_w"], p["item_embed_linear_b"],
                 p["user_b1"], p["user_att_w"], p["user_att_b"])
    i_agg = side(i_fea, u_import, i_mask, item_embed,
                 p["item_review_w"], p["item_review_b"],
                 p["user_embed_linear_w"], p["user_embed_linear_b"],
                 p["item_b1"], p["item_att_w"], p["item_att_b"])
    return ((u_agg * i_agg) @ p["predictor_w"]).reshape(-1)


if __name__ == "__main__":
    # Small shapes implied by the forward pass (n_filters must equal fc_dim).
    vocab, word_dim = 50, 32
    n_filters = fc_dim = 32
    kernel_size = 3
    b_s, u_n_r, i_n_r, n_t = 2, 3, 4, 8
    user_size, item_size = 10, 12

    key = jax.random.PRNGKey(0)
    pkey, dkey = jax.random.split(key)
    params = init_params(pkey, vocab, word_dim, n_filters, kernel_size,
                         fc_dim, user_size, item_size)

    ks = jax.random.split(dkey, 6)
    user_id = jax.random.randint(ks[0], (b_s,), 0, user_size)
    item_id = jax.random.randint(ks[1], (b_s,), 0, item_size)
    user_doc = jax.random.randint(ks[2], (b_s, u_n_r, n_t), 0, vocab)
    item_doc = jax.random.randint(ks[3], (b_s, i_n_r, n_t), 0, vocab)
    # ids with some zeros (zero = padding review slot)
    user2item_id = jax.random.randint(ks[4], (b_s, u_n_r), 0, item_size)
    item2user_id = jax.random.randint(ks[5], (b_s, i_n_r), 0, user_size)

    r = narre_forward(params, user_id, item_id, user_doc, item_doc,
                      user2item_id, item2user_id, kernel_size)
    r = jax.block_until_ready(r)

    r_ref = narre_forward_ref(params, user_id, item_id, user_doc, item_doc,
                              user2item_id, item2user_id, kernel_size)
    assert r.shape == (b_s,)
    # bf16 MXU operands (f32 accumulation + approx reciprocal) -> compare the
    # f32 reference with a bf16-sized tolerance.
    assert jnp.allclose(r, r_ref, rtol=3e-2, atol=4e-3), (r, r_ref)

    print("KERNEL_OK")
</pallas_src>

<mosaic_0001>
module attributes {stable_mosaic.version = 11 : i64} {
  func.func @review_cnn_kernel(%arg0: i32, %arg1: memref<6x8x32xbf16, #tpu.memory_space<vmem>>, %arg2: memref<96x128xbf16, #tpu.memory_space<vmem>>, %arg3: memref<1x128xf32, #tpu.memory_space<vmem>>, %arg4: memref<6x128xf32, #tpu.memory_space<vmem>>) attributes {dimension_semantics = [#tpu.dimension_semantics<parallel>], iteration_bounds = array<i64: 1>, scalar_prefetch = 0 : i64, scratch_operands = 0 : i64, tpu.core_type = #tpu.core_type<tc>, window_params = [{transform_indices = @transform_0, window_bounds = array<i64: 6, 8, 32>}, {pipeline_mode = #tpu.pipeline_mode<synchronous>, transform_indices = @transform_1, window_bounds = array<i64: 96, 128>}, {pipeline_mode = #tpu.pipeline_mode<synchronous>, transform_indices = @transform_2, window_bounds = array<i64: 1, 128>}, {transform_indices = @transform_3, window_bounds = array<i64: 6, 128>}]} {
    %c0 = arith.constant 0 : index
    %c0_0 = arith.constant 0 : index
    %c0_1 = arith.constant 0 : index
    %0 = vector.load %arg1[%c0, %c0_0, %c0_1] : memref<6x8x32xbf16, #tpu.memory_space<vmem>>, vector<6x8x32xbf16>
    %c0_2 = arith.constant 0 : index
    %c0_3 = arith.constant 0 : index
    %1 = vector.load %arg2[%c0_2, %c0_3] : memref<96x128xbf16, #tpu.memory_space<vmem>>, vector<96x128xbf16>
    %c0_4 = arith.constant 0 : index
    %c0_5 = arith.constant 0 : index
    %2 = vector.load %arg3[%c0_4, %c0_5] : memref<1x128xf32, #tpu.memory_space<vmem>>, vector<1x128xf32>
    %3 = vector.extract_strided_slice %0 {offsets = [0, 0, 0], sizes = [6, 6, 32], strides = [1, 1, 1]} : vector<6x8x32xbf16> to vector<6x6x32xbf16>
    %4 = vector.extract_strided_slice %0 {offsets = [0, 1, 0], sizes = [6, 6, 32], strides = [1, 1, 1]} : vector<6x8x32xbf16> to vector<6x6x32xbf16>
    %5 = vector.extract_strided_slice %0 {offsets = [0, 2, 0], sizes = [6, 6, 32], strides = [1, 1, 1]} : vector<6x8x32xbf16> to vector<6x6x32xbf16>
    %6 = tpu.concatenate %3, %4, %5 in 2 : vector<6x6x32xbf16>, vector<6x6x32xbf16>, vector<6x6x32xbf16> -> vector<6x6x96xbf16>
    %cst = arith.constant dense<0.000000e+00> : vector<6x6x128xf32>
    %7 = tpu.matmul %6, %1, %cst {dimension_numbers = #tpu.dot_dimension_numbers<[2], [0], [0, 1], [1], [0, 0, 0, 1, 1, 1], [], []>} : vector<6x6x96xbf16>, vector<96x128xbf16>, vector<6x6x128xf32> -> vector<6x6x128xf32>
    %8 = vector.shape_cast %2 : vector<1x128xf32> to vector<1x1x128xf32>
    %9 = vector.broadcast %8 : vector<1x1x128xf32> to vector<6x6x128xf32>
    %10 = arith.addf %7, %9 : vector<6x6x128xf32>
    %cst_6 = arith.constant 0.000000e+00 : f32
    %11 = vector.broadcast %cst_6 : f32 to vector<6x6x128xf32>
    %12 = arith.maximumf %10, %11 : vector<6x6x128xf32>
    %cst_7 = arith.constant dense<0xFF800000> : vector<6x128xf32>
    %13 = vector.multi_reduction <maximumf>, %12, %cst_7 [1] : vector<6x6x128xf32> to vector<6x128xf32>
    %c0_8 = arith.constant 0 : index
    %c0_9 = arith.constant 0 : index
    %14 = vector.load %arg4[%c0_8, %c0_9] : memref<6x128xf32, #tpu.memory_space<vmem>>, vector<6x128xf32>
    tpu.vector_store %arg4[%c0_8, %c0_9], %13 {strides = array<i32>} : memref<6x128xf32, #tpu.memory_space<vmem>>, vector<6x128xf32>,
    return
  }
  func.func @transform_0(%arg0: i32) -> (i32, i32, i32) {
    %c0_i32 = arith.constant 0 : i32
    %c0_i32_0 = arith.constant 0 : i32
    %c0_i32_1 = arith.constant 0 : i32
    return %arg0, %c0_i32, %c0_i32_0 : i32, i32, i32
  }
  func.func @transform_1(%arg0: i32) -> (i32, i32) {
    %c0_i32 = arith.constant 0 : i32
    %c0_i32_0 = arith.constant 0 : i32
    %c0_i32_1 = arith.constant 0 : i32
    return %c0_i32, %c0_i32_0 : i32, i32
  }
  func.func @transform_2(%arg0: i32) -> (i32, i32) {
    %c0_i32 = arith.constant 0 : i32
    %c0_i32_0 = arith.constant 0 : i32
    %c0_i32_1 = arith.constant 0 : i32
    return %c0_i32, %c0_i32_0 : i32, i32
  }
  func.func @transform_3(%arg0: i32) -> (i32, i32) {
    %c0_i32 = arith.constant 0 : i32
    %c0_i32_0 = arith.constant 0 : i32
    return %arg0, %c0_i32 : i32, i32
  }
}

</mosaic_0001>

<llo_original>
// kernel: tpu_custom_call.1
$region0: #{tpu_custom_call.1}
  #allocation0 [shape = 'u32[]', space=smem, size = 0x4, offset = 0x4, fixed_abs, tag = 'smem constant byte address 0x4 - core index']
  #allocation1 [shape = 'u32[72,128]{1,0:T(1,128)}', space=vmem, size = 0x9000, scoped, tag = 'internal scratch']
  %s0 = inlined_call_operand.hbm [shape: bf16[6,8,32], index: 0, kind: input, shape index: {}]
  %s1 = inlined_call_operand.hbm [shape: bf16[96,128], index: 1, kind: input, shape index: {}]
  %s2 = inlined_call_operand.vmem [shape: f32[1,128], index: 2, kind: input, shape index: {}]
  %s3 = inlined_call_operand.hbm [shape: f32[6,128], index: 3, kind: output, shape index: {}]
  %s4 = sld [smem:[#allocation0]]
  $region30: #{tpu_custom_call.1} parent=0
    _
  %s6 = ssub.s32 1, %s4
  %s7 = scalar_select 0, %s6, %s4
  $region1: #{tpu_custom_call.1} parent=0
    #allocation2 [shape = 'u8[12288]{0}', space=vmem, size = 0x3000, scoped, tag = 'input window, operand 0, single buffered']
    #allocation3 [shape = 's32[1]{0}', space=sflag, size = 0x4, scoped, tag = 'scoped memory for tpu_custom_call.1']
    #allocation4 [shape = 's32[1]{0}', space=sflag, size = 0x4, scoped, tag = 'scoped memory for tpu_custom_call.1']
    #allocation5 [shape = 'u8[24576]{0}', space=vmem, size = 0x6000, scoped, tag = 'input window, operand 1, single buffered']
    #allocation6 [shape = 's32[1]{0}', space=sflag, size = 0x4, scoped, tag = 'scoped memory for tpu_custom_call.1']
    #allocation7 [shape = 'u8[4096]{0}', space=vmem, size = 0x1000, scoped, tag = 'output window, operand 0, single buffered']
    %8 = vsyncpa [#allocation3], 0
    %9 = vsyncpa [#allocation6], 0
    %10 = vsyncpa [#allocation4], 0
    // Predicated region
    $region2: #{tpu_custom_call.1} parent=1 // pred_check
      _
    $region3: #{tpu_custom_call.1} parent=1 // pred_check_branch
      %12 = sbr.rel (0) target = $region5
    $region4: #{tpu_custom_call.1} parent=1 // pred_region
      %14 = vsyncadd [#allocation3], 0
      %s15 = sshll.u32 %s0, 4
      %s16 = int_to_ptr.hbm [resolvable:$true] %s15
      %s17 = sshll.u32 [#allocation2], 4
      %s18 = int_to_ptr.vmem [resolvable:$true] %s17
      %23 = dma.hbm_to_vmem [thread:$0]  %s16, 384, %s18, [#allocation3], 64, 64, 4
    $region5: #{tpu_custom_call.1} parent=1 // pred_fallthru
      _
    // Predicated region
    $region6: #{tpu_custom_call.1} parent=1 // pred_check
      _
    $region7: #{tpu_custom_call.1} parent=1 // pred_check_branch
      %25 = sbr.rel (0) target = $region9
    $region8: #{tpu_custom_call.1} parent=1 // pred_region
      %27 = vsyncadd [#allocation6], 0
      %s28 = sshll.u32 %s1, 4
      %s29 = int_to_ptr.hbm [resolvable:$true] %s28
      %s30 = sshll.u32 [#allocation5], 4
      %s31 = int_to_ptr.vmem [resolvable:$true] %s30
      %36 = dma.hbm_to_vmem [thread:$0]  %s29, 768, %s31, [#allocation6], 64, 64, 4
    $region9: #{tpu_custom_call.1} parent=1 // pred_fallthru
      _
    // Predicated region
    $region10: #{tpu_custom_call.1} parent=1 // pred_check
      _
    $region11: #{tpu_custom_call.1} parent=1 // pred_check_branch
      %38 = sbr.rel (0) target = $region13
    $region12: #{tpu_custom_call.1} parent=1 // pred_region
      _
    $region13: #{tpu_custom_call.1} parent=1 // pred_fallthru
      _
    // Predicated region
    $region14: #{tpu_custom_call.1} parent=1 // pred_check
      _
    $region15: #{tpu_custom_call.1} parent=1 // pred_check_branch
      %40 = sbr.rel (0) target = $region17
    $region16: #{tpu_custom_call.1} parent=1 // pred_region
      %42 = dma.done [#allocation3], 384
    $region17: #{tpu_custom_call.1} parent=1 // pred_fallthru
      _
    // Predicated region
    $region18: #{tpu_custom_call.1} parent=1 // pred_check
      _
    $region19: #{tpu_custom_call.1} parent=1 // pred_check_branch
      %44 = sbr.rel (0) target = $region21
    $region20: #{tpu_custom_call.1} parent=1 // pred_region
      %46 = dma.done [#allocation6], 768
    $region21: #{tpu_custom_call.1} parent=1 // pred_fallthru
      _
    %v48 = vld [vmem:[#allocation2] sm:$0xf]
    %v49 = vld [vmem:[#allocation2 + $0x4] sm:$0xf]
    %v50 = vld [vmem:[#allocation2 + $0x8] sm:$0xf]
    %v51 = vld [vmem:[#allocation2 + $0xc] sm:$0xf]
    %v52 = vld [vmem:[#allocation2 + $0x10] sm:$0xf]
    %v53 = vld [vmem:[#allocation2 + $0x14] sm:$0xf]
    %v54 = vld [vmem:[#allocation5] sm:$0xf]
    %v55 = vld [vmem:[#allocation5 + $0x4] sm:$0xf]
    %v56 = vld [vmem:[#allocation5 + $0x8] sm:$0xf]
    %v57 = vld [vmem:[#allocation5 + $0xc] sm:$0xf]
    %v58 = vld [vmem:[#allocation5 + $0x10] sm:$0xf]
    %v59 = vld [vmem:[#allocation5 + $0x14] sm:$0xf]
    %v60 = vld [vmem:[#allocation5 + $0x18] sm:$0xf]
    %v61 = vld [vmem:[#allocation5 + $0x1c] sm:$0xf]
    %v62 = vld [vmem:[#allocation5 + $0x20] sm:$0xf]
    %v63 = vld [vmem:[#allocation5 + $0x24] sm:$0xf]
    %v64 = vld [vmem:[#allocation5 + $0x28] sm:$0xf]
    %v65 = vld [vmem:[#allocation5 + $0x2c] sm:$0xf]
    %v66 = vld [vmem:[%s2] sm:$0x1]
    %v73 = vunpack.c.l.b16 %v48
    %v74 = vunpack.c.l.b16 %v49
    %v75 = vunpack.c.l.b16 %v50
    %v76 = vunpack.c.l.b16 %v51
    %v77 = vunpack.c.l.b16 %v52
    %v78 = vunpack.c.l.b16 %v53
    %v79 = vpack.c.b16 %v73, %v73
    %v80 = vpack.c.b16 %v74, %v74
    %v81 = vpack.c.b16 %v75, %v75
    %v82 = vpack.c.b16 %v76, %v76
    %v83 = vpack.c.b16 %v77, %v77
    %v84 = vpack.c.b16 %v78, %v78
    %v86 = vshrl.u32 %v79, 16
    %v88 = vshll.u32 %v79, 16
    %v90 = vrot.slane %v88, 1
    %v91 = vor.u32 %v86, %v90
    %v93 = vshrl.u32 %v80, 16
    %v95 = vshll.u32 %v80, 16
    %v97 = vrot.slane %v95, 1
    %v98 = vor.u32 %v93, %v97
    %v100 = vshrl.u32 %v81, 16
    %v102 = vshll.u32 %v81, 16
    %v104 = vrot.slane %v102, 1
    %v105 = vor.u32 %v100, %v104
    %v107 = vshrl.u32 %v82, 16
    %v109 = vshll.u32 %v82, 16
    %v111 = vrot.slane %v109, 1
    %v112 = vor.u32 %v107, %v111
    %v114 = vshrl.u32 %v83, 16
    %v116 = vshll.u32 %v83, 16
    %v118 = vrot.slane %v116, 1
    %v119 = vor.u32 %v114, %v118
    %v121 = vshrl.u32 %v84, 16
    %v123 = vshll.u32 %v84, 16
    %v125 = vrot.slane %v123, 1
    %v126 = vor.u32 %v121, %v125
    %127 = vrot.lane.b32.xlu0 %v91, 32
    %v128 = vpop.permute.xlu0 %127
    %129 = vrot.lane.b32.xlu0 %v98, 32
    %v130 = vpop.permute.xlu0 %129
    %131 = vrot.lane.b32.xlu0 %v105, 32
    %v132 = vpop.permute.xlu0 %131
    %133 = vrot.lane.b32.xlu0 %v112, 32
    %v134 = vpop.permute.xlu0 %133
    %135 = vrot.lane.b32.xlu0 %v119, 32
    %v136 = vpop.permute.xlu0 %135
    %137 = vrot.lane.b32.xlu0 %v126, 32
    %v138 = vpop.permute.xlu0 %137
    %v139 = vrot.slane %v79, 1
    %v140 = vrot.slane %v80, 1
    %v141 = vrot.slane %v81, 1
    %v142 = vrot.slane %v82, 1
    %v143 = vrot.slane %v83, 1
    %v144 = vrot.slane %v84, 1
    %145 = vrot.lane.b32.xlu0 %v139, 64
    %v146 = vpop.permute.xlu0 %145
    %147 = vrot.lane.b32.xlu0 %v140, 64
    %v148 = vpop.permute.xlu0 %147
    %149 = vrot.lane.b32.xlu0 %v141, 64
    %v150 = vpop.permute.xlu0 %149
    %151 = vrot.lane.b32.xlu0 %v142, 64
    %v152 = vpop.permute.xlu0 %151
    %153 = vrot.lane.b32.xlu0 %v143, 64
    %v154 = vpop.permute.xlu0 %153
    %155 = vrot.lane.b32.xlu0 %v144, 64
    %v156 = vpop.permute.xlu0 %155
    %vm157 = vcmask 261120
    %v160 = vsel %vm157, %v48, %v128
    %v163 = vsel %vm157, %v49, %v130
    %v166 = vsel %vm157, %v50, %v132
    %v169 = vsel %vm157, %v51, %v134
    %v172 = vsel %vm157, %v52, %v136
    %v175 = vsel %vm157, %v53, %v138
    %vm176 = vcmask 523264
    %v178 = vsel %vm176, %v160, %v146
    %v180 = vsel %vm176, %v163, %v148
    %v182 = vsel %vm176, %v166, %v150
    %v184 = vsel %vm176, %v169, %v152
    %v186 = vsel %vm176, %v172, %v154
    %v188 = vsel %vm176, %v175, %v156
    %v190 = vperm.slane %v66, 0
    %v197 = vrot.slane %v178, 1
    %v198 = vrot.slane %v178, 2
    %v199 = vrot.slane %v180, 1
    %v200 = vrot.slane %v180, 2
    %v201 = vrot.slane %v182, 1
    %v202 = vrot.slane %v182, 2
    %v203 = vrot.slane %v184, 1
    %v204 = vrot.slane %v184, 2
    %v205 = vrot.slane %v186, 1
    %v206 = vrot.slane %v186, 2
    %v207 = vrot.slane %v188, 1
    %v208 = vrot.slane %v188, 2
    %v209 = vrot.slane %v190, 2
    %v210 = vrot.slane %v190, 4
    %211 = vst [vmem:[#allocation1] ss:$9 sm:$0xff] %v178
    %s213 = scalar_lea.vmem [#allocation1], 1
    %214 = vst [vmem:[%s213] ss:$9 sm:$0xff] %v197
    %s216 = scalar_lea.vmem [#allocation1], 2
    %217 = vst [vmem:[%s216] ss:$9 sm:$0xff] %v198
    %s218 = scalar_lea.vmem [#allocation1], 3
    %219 = vst [vmem:[%s218] ss:$9 sm:$0xff] %v180
    %s221 = scalar_lea.vmem [#allocation1], 4
    %222 = vst [vmem:[%s221] ss:$9 sm:$0xff] %v199
    %s224 = scalar_lea.vmem [#allocation1], 5
    %225 = vst [vmem:[%s224] ss:$9 sm:$0xff] %v200
    %s226 = scalar_lea.vmem [#allocation1], 6
    %227 = vst [vmem:[%s226] ss:$9 sm:$0xff] %v182
    %s229 = scalar_lea.vmem [#allocation1], 7
    %230 = vst [vmem:[%s229] ss:$9 sm:$0xff] %v201
    %v231 = vld [vmem:[#allocation1] sm:$0xff]
    %233 = vst [vmem:[#allocation1] ss:$9 sm:$0xff] %v202
    %234 = vst [vmem:[%s213] ss:$9 sm:$0xff] %v184
    %236 = vst [vmem:[%s216] ss:$9 sm:$0xff] %v203
    %238 = vst [vmem:[%s218] ss:$9 sm:$0xff] %v204
    %239 = vst [vmem:[%s221] ss:$9 sm:$0xff] %v186
    %241 = vst [vmem:[%s224] ss:$9 sm:$0xff] %v205
    %243 = vst [vmem:[%s226] ss:$9 sm:$0xff] %v206
    %244 = vst [vmem:[%s229] ss:$9 sm:$0xff] %v188
    %v245 = vld [vmem:[#allocation1] sm:$0xff]
    %247 = vst [vmem:[#allocation1] ss:$9 sm:$0xff] %v207
    %249 = vst [vmem:[%s213] ss:$9 sm:$0xff] %v208
    %v250 = vld [vmem:[#allocation1] sm:$0xff]
    %v263 = vunpack.c.l.b16 %v54
    %v264 = vunpack.c.l.b16 %v55
    %v265 = vunpack.c.l.b16 %v56
    %v266 = vunpack.c.l.b16 %v57
    %v267 = vunpack.c.l.b16 %v58
    %v268 = vunpack.c.l.b16 %v59
    %v269 = vunpack.c.l.b16 %v60
    %v270 = vunpack.c.l.b16 %v61
    %v271 = vunpack.c.l.b16 %v62
    %v272 = vunpack.c.l.b16 %v63
    %v273 = vunpack.c.l.b16 %v64
    %v274 = vunpack.c.l.b16 %v65
    %v275 = vpack.c.b16 %v264, %v263
    %v276 = vpack.c.b16 %v266, %v265
    %v277 = vpack.c.b16 %v268, %v267
    %v278 = vpack.c.b16 %v270, %v269
    %v279 = vpack.c.b16 %v272, %v271
    %v280 = vpack.c.b16 %v274, %v273
    %287 = vst [vmem:[#allocation1] ss:$4 sm:$0xff] %v190
    %s288 = scalar_lea.vmem [#allocation1], 1
    %289 = vst [vmem:[%s288] ss:$4 sm:$0xff] %v209
    %s290 = scalar_lea.vmem [#allocation1], 2
    %291 = vst [vmem:[%s290] ss:$4 sm:$0xff] %v210
    %s292 = scalar_lea.vmem [#allocation1], 3
    %293 = vst [vmem:[%s292] ss:$4 sm:$0xff] %v190
    %s294 = scalar_lea.vmem [#allocation1], 32
    %295 = vst [vmem:[%s294] ss:$4 sm:$0xff] %v209
    %s296 = scalar_lea.vmem [#allocation1], 33
    %297 = vst [vmem:[%s296] ss:$4 sm:$0xff] %v210
    %s298 = scalar_lea.vmem [#allocation1], 34
    %299 = vst [vmem:[%s298] ss:$4 sm:$0xff] %v190
    %s300 = scalar_lea.vmem [#allocation1], 35
    %301 = vst [vmem:[%s300] ss:$4 sm:$0xff] %v209
    %v302 = vld.sshfl [vmem:[#allocation1] sm:$0xff pattern:$0x73625140]
    %v303 = vld.sshfl [vmem:[#allocation1 + $0x20] sm:$0xff pattern:$0x73625140]
    %304 = vst [vmem:[#allocation1] ss:$4 sm:$0xff] %v210
    %305 = vst [vmem:[%s288] ss:$4 sm:$0xff] %v190
    %306 = vst [vmem:[%s290] ss:$4 sm:$0xff] %v209
    %307 = vst [vmem:[%s292] ss:$4 sm:$0xff] %v210
    %308 = vst [vmem:[%s294] ss:$4 sm:$0xff] %v190
    %309 = vst [vmem:[%s296] ss:$4 sm:$0xff] %v209
    %310 = vst [vmem:[%s298] ss:$4 sm:$0xff] %v210
    %311 = vst [vmem:[%s300] ss:$4 sm:$0xff] %v190
    %v312 = vld.sshfl [vmem:[#allocation1] sm:$0xff pattern:$0x73625140]
    %v313 = vld.sshfl [vmem:[#allocation1 + $0x20] sm:$0xff pattern:$0x73625140]
    %314 = vst [vmem:[#allocation1] ss:$4 sm:$0xff] %v209
    %315 = vst [vmem:[%s288] ss:$4 sm:$0xff] %v210
    %v316 = vld.sshfl [vmem:[#allocation1] sm:$0xff pattern:$0x73625140]
    %vm322 = vcmask 785408
    %v323 = vsel %vm322, %v231, 0
    %v325 = vsel %vm322, %v245, 0
    %v327 = vsel %vm322, %v250, 0
    %329 = vmatpush.bf16.msra.mxu0 0
    %330 = vmatpush.bf16.msra.mxu0 0
    %331 = vmatpush.bf16.msra.mxu0 %v280
    %332 = vmatpush.bf16.msra.mxu0 %v279
    %333 = vmatpush.bf16.msra.mxu0 %v278
    %334 = vmatpush.bf16.msra.mxu0 %v277
    %335 = vmatpush.bf16.msra.mxu0 %v276
    %336 = vmatpush.bf16.msra.mxu0 %v275
    %337 = vmatmul.bf16.gmra.mxu0 %v323
    %v338 = vpop.f32.mrf.mxu0
    %v339 = vadd.f32 %v302, %v338
    %v340 = vpop.f32.mrf.mxu0
    %v341 = vadd.f32 %v303, %v340
    %342 = vmatmul.bf16.gmra.mxu0 %v325
    %v343 = vpop.f32.mrf.mxu0
    %v344 = vadd.f32 %v312, %v343
    %v345 = vpop.f32.mrf.mxu0
    %v346 = vadd.f32 %v313, %v345
    %347 = vmatmul.bf16.gmra.mxu0 %v327
    %v348 = vpop.f32.mrf.mxu0
    %v349 = vadd.f32 %v316, %v348
    %v350 = vpop.f32.mrf.mxu0
    %351 = vdwg.mxu0
    %v357 = vrot.slane %v339, 2
    %v358 = vrot.slane %v339, 4
    %v359 = vrot.slane %v339, 6
    %v360 = vrot.slane %v341, 2
    %v361 = vrot.slane %v341, 4
    %v362 = vrot.slane %v341, 6
    %v363 = vrot.slane %v344, 2
    %v364 = vrot.slane %v344, 4
    %v365 = vrot.slane %v344, 6
    %v366 = vrot.slane %v346, 2
    %v367 = vrot.slane %v346, 4
    %v368 = vrot.slane %v346, 6
    %v369 = vrot.slane %v349, 2
    %v383 = vmax.f32 %v339, 0.0
    %v384 = vmax.f32 %v357, 0.0
    %v385 = vmax.f32 %v358, 0.0
    %v386 = vmax.f32 %v359, 0.0
    %v387 = vmax.f32 %v341, 0.0
    %v388 = vmax.f32 %v360, 0.0
    %v389 = vmax.f32 %v361, 0.0
    %v390 = vmax.f32 %v362, 0.0
    %v391 = vmax.f32 %v344, 0.0
    %v392 = vmax.f32 %v363, 0.0
    %v393 = vmax.f32 %v364, 0.0
    %v394 = vmax.f32 %v365, 0.0
    %v395 = vmax.f32 %v346, 0.0
    %v396 = vmax.f32 %v366, 0.0
    %v397 = vmax.f32 %v367, 0.0
    %v398 = vmax.f32 %v368, 0.0
    %v399 = vmax.f32 %v349, 0.0
    %v400 = vmax.f32 %v369, 0.0
    %419 = vst [vmem:[#allocation1] ss:$4 sm:$0xff] %v383
    %s420 = scalar_lea.vmem [#allocation1], 1
    %421 = vst [vmem:[%s420] ss:$4 sm:$0xff] %v384
    %s422 = scalar_lea.vmem [#allocation1], 2
    %423 = vst [vmem:[%s422] ss:$4 sm:$0xff] %v385
    %v424 = vld.sshfl [vmem:[#allocation1] sm:$0xff pattern:$0x73625140]
    %s425 = scalar_lea.vmem [#allocation1], 32
    %426 = vst [vmem:[%s425] ss:$4 sm:$0xff] %v386
    %s427 = scalar_lea.vmem [#allocation1], 33
    %428 = vst [vmem:[%s427] ss:$4 sm:$0xff] %v387
    %s429 = scalar_lea.vmem [#allocation1], 34
    %430 = vst [vmem:[%s429] ss:$4 sm:$0xff] %v388
    %v431 = vld.sshfl [vmem:[#allocation1 + $0x20] sm:$0xff pattern:$0x73625140]
    %432 = vst [vmem:[#allocation1] ss:$4 sm:$0xff] %v389
    %433 = vst [vmem:[%s420] ss:$4 sm:$0xff] %v390
    %434 = vst [vmem:[%s422] ss:$4 sm:$0xff] %v391
    %v435 = vld.sshfl [vmem:[#allocation1] sm:$0xff pattern:$0x73625140]
    %436 = vst [vmem:[%s425] ss:$4 sm:$0xff] %v392
    %437 = vst [vmem:[%s427] ss:$4 sm:$0xff] %v393
    %438 = vst [vmem:[%s429] ss:$4 sm:$0xff] %v394
    %v439 = vld.sshfl [vmem:[#allocation1 + $0x20] sm:$0xff pattern:$0x73625140]
    %440 = vst [vmem:[#allocation1] ss:$4 sm:$0xff] %v395
    %441 = vst [vmem:[%s420] ss:$4 sm:$0xff] %v396
    %442 = vst [vmem:[%s422] ss:$4 sm:$0xff] %v397
    %v443 = vld.sshfl [vmem:[#allocation1] sm:$0xff pattern:$0x73625140]
    %444 = vst [vmem:[%s425] ss:$4 sm:$0xff] %v398
    %445 = vst [vmem:[%s427] ss:$4 sm:$0xff] %v399
    %446 = vst [vmem:[%s429] ss:$4 sm:$0xff] %v400
    %v447 = vld.sshfl [vmem:[#allocation1 + $0x20] sm:$0xff pattern:$0x73625140]
    %vm454 = vcmask 1045504
    %v455 = vsel %vm454, %v424, -inf
    %v456 = vrot.slane %v455, 4
    %v457 = vmax.f32 %v455, %v456
    %v458 = vrot.slane %v457, 2
    %v459 = vmax.f32 %v457, %v458
    %v460 = vrot.slane %v459, 1
    %v461 = vmax.f32 %v459, %v460
    %v462 = vsel %vm454, %v431, -inf
    %v463 = vrot.slane %v462, 4
    %v464 = vmax.f32 %v462, %v463
    %v465 = vrot.slane %v464, 2
    %v466 = vmax.f32 %v464, %v465
    %v467 = vrot.slane %v466, 1
    %v468 = vmax.f32 %v466, %v467
    %v469 = vsel %vm454, %v435, -inf
    %v470 = vrot.slane %v469, 4
    %v471 = vmax.f32 %v469, %v470
    %v472 = vrot.slane %v471, 2
    %v473 = vmax.f32 %v471, %v472
    %v474 = vrot.slane %v473, 1
    %v475 = vmax.f32 %v473, %v474
    %v476 = vsel %vm454, %v439, -inf
    %v477 = vrot.slane %v476, 4
    %v478 = vmax.f32 %v476, %v477
    %v479 = vrot.slane %v478, 2
    %v480 = vmax.f32 %v478, %v479
    %v481 = vrot.slane %v480, 1
    %v482 = vmax.f32 %v480, %v481
    %v483 = vsel %vm454, %v443, -inf
    %v484 = vrot.slane %v483, 4
    %v485 = vmax.f32 %v483, %v484
    %v486 = vrot.slane %v485, 2
    %v487 = vmax.f32 %v485, %v486
    %v488 = vrot.slane %v487, 1
    %v489 = vmax.f32 %v487, %v488
    %v490 = vsel %vm454, %v447, -inf
    %v491 = vrot.slane %v490, 4
    %v492 = vmax.f32 %v490, %v491
    %v493 = vrot.slane %v492, 2
    %v494 = vmax.f32 %v492, %v493
    %v495 = vrot.slane %v494, 1
    %v496 = vmax.f32 %v494, %v495
    %vm503 = vcmask 1041409
    %v504 = vsel %vm503, %v468, %v461
    %vm505 = vcmask 1042434
    %v506 = vsel %vm505, %v475, %v504
    %vm507 = vcmask 1043459
    %v508 = vsel %vm507, %v482, %v506
    %vm509 = vcmask 1044484
    %v510 = vsel %vm509, %v489, %v508
    %vm511 = vcmask 1045509
    %v512 = vsel %vm511, %v496, %v510
    %514 = vst [vmem:[#allocation7] sm:$0x3f] %v512
    // Predicated region
    $region22: #{tpu_custom_call.1} parent=1 // pred_check
      _
    $region23: #{tpu_custom_call.1} parent=1 // pred_check_branch
      %516 = sbr.rel (0) target = $region25
    $region24: #{tpu_custom_call.1} parent=1 // pred_region
      %518 = vsyncadd [#allocation4], 0
      %s520 = sshll.u32 [#allocation7], 4
      %s521 = int_to_ptr.vmem [resolvable:$true] %s520
      %s522 = sshll.u32 %s3, 4
      %s523 = int_to_ptr.hbm [resolvable:$true] %s522
      %525 = dma.vmem_to_hbm [thread:$0]  %s521, 128, %s523, [#allocation4]
    $region25: #{tpu_custom_call.1} parent=1 // pred_fallthru
      _
    // Predicated region
    $region26: #{tpu_custom_call.1} parent=1 // pred_check
      _
    $region27: #{tpu_custom_call.1} parent=1 // pred_check_branch
      %527 = sbr.rel (0) target = $region29
    $region28: #{tpu_custom_call.1} parent=1 // pred_region
      %529 = dma.done [#allocation4], 128
    $region29: #{tpu_custom_call.1} parent=1 // pred_fallthru
      _
    %530 = vsyncpa [#allocation3], 1
    %531 = vsyncpa [#allocation6], 1
    %532 = vsyncpa [#allocation4], 1

</llo_original>
